<compile_context>
chip_gen: v5e
topology: v5e:2x2
jax: 0.10.0
libtpu: 0.0.40
codegen_flags: <defaults>
</compile_context>

<pallas_src>
import jax
import jax.numpy as jnp
from jax.experimental import pallas as pl
from jax.experimental.pallas import tpu as pltpu

STATE_NUM = 4    # CartPole-v0 observation_space.shape[0]
ACTION_NUM = 2   # CartPole-v0 action_space.n
HIDDEN = 50

HIDDEN_PAD = 128   # lane-dense hidden width
OUT_PAD = 128      # lane-dense output width
TILE_B = 512       # batch tile (v7x/v6e/v5e safe; sweepable upward on v5e/v6e)


def _round_up(n, m):
    return ((n + m - 1) // m) * m


def net_kernel(x_ref, w1_ref, b1_ref, w2_ref, b2_ref, o_ref):
    x = x_ref[...]        # [tb, STATE_NUM]  (4 lanes; VMEM-padded regardless)
    w1 = w1_ref[...]      # [STATE_NUM, HIDDEN_PAD]

    # Layer 1 on the VPU: K=4 contraction as 4 broadcast-FMAs (skips MXU
    # padding for a 4-deep contraction). Static unroll, traced once.
    h = b1_ref[...] + x[:, 0:1] * w1[0:1, :]             # [tb, HIDDEN_PAD]
    for k in range(1, STATE_NUM):
        h = h + x[:, k:k + 1] * w1[k:k + 1, :]
    h = jnp.maximum(h, 0.0)                               # ReLU

    # Layer 2 on the MXU: lane-dense [tb,128] @ [128,128] -> [tb,128].
    o = jnp.dot(h, w2_ref[...], preferred_element_type=jnp.float32) + b2_ref[...]
    o_ref[...] = o.astype(o_ref.dtype)                    # unmasked full-lane vst


def net_forward(x, w1, b1, w2, b2, *, tile_b=TILE_B):
    """x: [B, STATE_NUM] f32; w1: [STATE_NUM, HIDDEN]; b1: [1, HIDDEN];
    w2: [HIDDEN, ACTION_NUM]; b2: [1, ACTION_NUM]  ->  [B, ACTION_NUM] f32."""
    B = x.shape[0]

    # Zero-pad parameters to lane-dense widths (padding contributes exactly 0:
    # relu(0 + 0) = 0 hidden units multiply zero w2 rows; extra out columns
    # are 0 and sliced away below).
    w1p = jnp.zeros((STATE_NUM, HIDDEN_PAD), jnp.float32).at[:, :HIDDEN].set(w1)
    b1p = jnp.zeros((1, HIDDEN_PAD), jnp.float32).at[:, :HIDDEN].set(b1)
    w2p = jnp.zeros((HIDDEN_PAD, OUT_PAD), jnp.float32).at[:HIDDEN, :ACTION_NUM].set(w2)
    b2p = jnp.zeros((1, OUT_PAD), jnp.float32).at[:, :ACTION_NUM].set(b2)

    # Pad the batch to a sublane-aligned multiple of the tile.
    tb = min(tile_b, _round_up(B, 8))
    b_pad = _round_up(B, tb)
    xp = x if b_pad == B else jnp.pad(x, ((0, b_pad - B), (0, 0)))

    grid = (b_pad // tb,)

    flops = 2 * b_pad * (STATE_NUM * HIDDEN_PAD + HIDDEN_PAD * OUT_PAD)
    bytes_accessed = 4 * (xp.size + w1p.size + b1p.size + w2p.size + b2p.size
                          + b_pad * OUT_PAD)

    out = pl.pallas_call(
        net_kernel,
        out_shape=jax.ShapeDtypeStruct((b_pad, OUT_PAD), jnp.float32),
        grid=grid,
        in_specs=[
            pl.BlockSpec((tb, STATE_NUM), lambda i: (i, 0)),          # x: tiled over B
            pl.BlockSpec((STATE_NUM, HIDDEN_PAD), lambda i: (0, 0)),  # w1: pinned
            pl.BlockSpec((1, HIDDEN_PAD), lambda i: (0, 0)),          # b1: pinned
            pl.BlockSpec((HIDDEN_PAD, OUT_PAD), lambda i: (0, 0)),    # w2: pinned
            pl.BlockSpec((1, OUT_PAD), lambda i: (0, 0)),             # b2: pinned
        ],
        out_specs=pl.BlockSpec((tb, OUT_PAD), lambda i: (i, 0)),
        compiler_params=pltpu.CompilerParams(
            dimension_semantics=("parallel",)),
        cost_estimate=pl.CostEstimate(
            flops=flops, transcendentals=0, bytes_accessed=bytes_accessed),
    )(xp, w1p, b1p, w2p, b2p)

    return out[:B, :ACTION_NUM]


def init_params(key):
    """Deterministic init matching the module's __init__ semantics:
    weights ~ Normal(0, 0.1); biases use PyTorch Linear's default
    Uniform(-1/sqrt(fan_in), 1/sqrt(fan_in)). Weights stored as [in, out]."""
    k1, k2, k3, k4 = jax.random.split(key, 4)
    w1 = 0.1 * jax.random.normal(k1, (STATE_NUM, HIDDEN), dtype=jnp.float32)
    w2 = 0.1 * jax.random.normal(k2, (HIDDEN, ACTION_NUM), dtype=jnp.float32)
    bound1 = 1.0 / jnp.sqrt(jnp.float32(STATE_NUM))
    bound2 = 1.0 / jnp.sqrt(jnp.float32(HIDDEN))
    b1 = jax.random.uniform(k3, (1, HIDDEN), jnp.float32, -bound1, bound1)
    b2 = jax.random.uniform(k4, (1, ACTION_NUM), jnp.float32, -bound2, bound2)
    return w1, b1, w2, b2


def _reference(x, w1, b1, w2, b2):
    return jnp.maximum(x @ w1 + b1, 0.0) @ w2 + b2


if __name__ == "__main__":
    key = jax.random.PRNGKey(0)
    kx, kx2, kp = jax.random.split(key, 3)
    w1, b1, w2, b2 = init_params(kp)

    # Small batch of CartPole states (single grid step).
    B = 8
    x = jax.random.normal(kx, (B, STATE_NUM), dtype=jnp.float32)
    out = jax.block_until_ready(net_forward(x, w1, b1, w2, b2))
    ref = _reference(x, w1, b1, w2, b2)
    assert out.shape == (B, ACTION_NUM)
    assert jnp.allclose(out, ref, atol=1e-5, rtol=1e-5)

    # Larger ragged batch: exercises batch padding + multi-step parallel grid.
    B2 = 1000
    x2 = jax.random.normal(kx2, (B2, STATE_NUM), dtype=jnp.float32)
    out2 = jax.block_until_ready(net_forward(x2, w1, b1, w2, b2))
    ref2 = _reference(x2, w1, b1, w2, b2)
    assert out2.shape == (B2, ACTION_NUM)
    assert jnp.allclose(out2, ref2, atol=1e-5, rtol=1e-5)

    print("KERNEL_OK")
</pallas_src>

<mosaic_0001>
module attributes {stable_mosaic.version = 11 : i64} {
  func.func @net_kernel(%arg0: i32, %arg1: memref<8x4xf32, #tpu.memory_space<vmem>>, %arg2: memref<4x128xf32, #tpu.memory_space<vmem>>, %arg3: memref<1x128xf32, #tpu.memory_space<vmem>>, %arg4: memref<128x128xf32, #tpu.memory_space<vmem>>, %arg5: memref<1x128xf32, #tpu.memory_space<vmem>>, %arg6: memref<8x128xf32, #tpu.memory_space<vmem>>) attributes {dimension_semantics = [#tpu.dimension_semantics<parallel>], iteration_bounds = array<i64: 1>, scalar_prefetch = 0 : i64, scratch_operands = 0 : i64, tpu.core_type = #tpu.core_type<tc>, window_params = [{transform_indices = @transform_0, window_bounds = array<i64: 8, 4>}, {pipeline_mode = #tpu.pipeline_mode<synchronous>, transform_indices = @transform_1, window_bounds = array<i64: 4, 128>}, {pipeline_mode = #tpu.pipeline_mode<synchronous>, transform_indices = @transform_2, window_bounds = array<i64: 1, 128>}, {pipeline_mode = #tpu.pipeline_mode<synchronous>, transform_indices = @transform_3, window_bounds = array<i64: 128, 128>}, {pipeline_mode = #tpu.pipeline_mode<synchronous>, transform_indices = @transform_4, window_bounds = array<i64: 1, 128>}, {transform_indices = @transform_5, window_bounds = array<i64: 8, 128>}]} {
    %c0 = arith.constant 0 : index
    %c0_0 = arith.constant 0 : index
    %0 = vector.load %arg1[%c0, %c0_0] : memref<8x4xf32, #tpu.memory_space<vmem>>, vector<8x4xf32>
    %c0_1 = arith.constant 0 : index
    %c0_2 = arith.constant 0 : index
    %1 = vector.load %arg2[%c0_1, %c0_2] : memref<4x128xf32, #tpu.memory_space<vmem>>, vector<4x128xf32>
    %c0_3 = arith.constant 0 : index
    %c0_4 = arith.constant 0 : index
    %2 = vector.load %arg3[%c0_3, %c0_4] : memref<1x128xf32, #tpu.memory_space<vmem>>, vector<1x128xf32>
    %3 = vector.extract_strided_slice %0 {offsets = [0, 0], sizes = [8, 1], strides = [1, 1]} : vector<8x4xf32> to vector<8x1xf32>
    %4 = vector.extract_strided_slice %1 {offsets = [0, 0], sizes = [1, 128], strides = [1, 1]} : vector<4x128xf32> to vector<1x128xf32>
    %5 = vector.broadcast %3 : vector<8x1xf32> to vector<8x128xf32>
    %6 = vector.broadcast %4 : vector<1x128xf32> to vector<8x128xf32>
    %7 = arith.mulf %5, %6 : vector<8x128xf32>
    %8 = vector.broadcast %2 : vector<1x128xf32> to vector<8x128xf32>
    %9 = arith.addf %8, %7 : vector<8x128xf32>
    %10 = vector.extract_strided_slice %0 {offsets = [0, 1], sizes = [8, 1], strides = [1, 1]} : vector<8x4xf32> to vector<8x1xf32>
    %11 = vector.extract_strided_slice %1 {offsets = [1, 0], sizes = [1, 128], strides = [1, 1]} : vector<4x128xf32> to vector<1x128xf32>
    %12 = vector.broadcast %10 : vector<8x1xf32> to vector<8x128xf32>
    %13 = vector.broadcast %11 : vector<1x128xf32> to vector<8x128xf32>
    %14 = arith.mulf %12, %13 : vector<8x128xf32>
    %15 = arith.addf %9, %14 : vector<8x128xf32>
    %16 = vector.extract_strided_slice %0 {offsets = [0, 2], sizes = [8, 1], strides = [1, 1]} : vector<8x4xf32> to vector<8x1xf32>
    %17 = vector.extract_strided_slice %1 {offsets = [2, 0], sizes = [1, 128], strides = [1, 1]} : vector<4x128xf32> to vector<1x128xf32>
    %18 = vector.broadcast %16 : vector<8x1xf32> to vector<8x128xf32>
    %19 = vector.broadcast %17 : vector<1x128xf32> to vector<8x128xf32>
    %20 = arith.mulf %18, %19 : vector<8x128xf32>
    %21 = arith.addf %15, %20 : vector<8x128xf32>
    %22 = vector.extract_strided_slice %0 {offsets = [0, 3], sizes = [8, 1], strides = [1, 1]} : vector<8x4xf32> to vector<8x1xf32>
    %23 = vector.extract_strided_slice %1 {offsets = [3, 0], sizes = [1, 128], strides = [1, 1]} : vector<4x128xf32> to vector<1x128xf32>
    %24 = vector.broadcast %22 : vector<8x1xf32> to vector<8x128xf32>
    %25 = vector.broadcast %23 : vector<1x128xf32> to vector<8x128xf32>
    %26 = arith.mulf %24, %25 : vector<8x128xf32>
    %27 = arith.addf %21, %26 : vector<8x128xf32>
    %cst = arith.constant 0.000000e+00 : f32
    %28 = vector.broadcast %cst : f32 to vector<8x128xf32>
    %29 = arith.maximumf %27, %28 : vector<8x128xf32>
    %c0_5 = arith.constant 0 : index
    %c0_6 = arith.constant 0 : index
    %30 = vector.load %arg4[%c0_5, %c0_6] : memref<128x128xf32, #tpu.memory_space<vmem>>, vector<128x128xf32>
    %cst_7 = arith.constant dense<0.000000e+00> : vector<8x128xf32>
    %31 = tpu.matmul %29, %30, %cst_7 {dimension_numbers = #tpu.dot_dimension_numbers<[1], [0], [0], [1], [0, 0, 1, 1], [], []>} : vector<8x128xf32>, vector<128x128xf32>, vector<8x128xf32> -> vector<8x128xf32>
    %c0_8 = arith.constant 0 : index
    %c0_9 = arith.constant 0 : index
    %32 = vector.load %arg5[%c0_8, %c0_9] : memref<1x128xf32, #tpu.memory_space<vmem>>, vector<1x128xf32>
    %33 = vector.broadcast %32 : vector<1x128xf32> to vector<8x128xf32>
    %34 = arith.addf %31, %33 : vector<8x128xf32>
    %c0_10 = arith.constant 0 : index
    %c0_11 = arith.constant 0 : index
    %35 = vector.load %arg6[%c0_10, %c0_11] : memref<8x128xf32, #tpu.memory_space<vmem>>, vector<8x128xf32>
    tpu.vector_store %arg6[%c0_10, %c0_11], %34 {strides = array<i32>} : memref<8x128xf32, #tpu.memory_space<vmem>>, vector<8x128xf32>,
    return
  }
  func.func @transform_0(%arg0: i32) -> (i32, i32) {
    %c0_i32 = arith.constant 0 : i32
    %c0_i32_0 = arith.constant 0 : i32
    return %arg0, %c0_i32 : i32, i32
  }
  func.func @transform_1(%arg0: i32) -> (i32, i32) {
    %c0_i32 = arith.constant 0 : i32
    %c0_i32_0 = arith.constant 0 : i32
    %c0_i32_1 = arith.constant 0 : i32
    return %c0_i32, %c0_i32_0 : i32, i32
  }
  func.func @transform_2(%arg0: i32) -> (i32, i32) {
    %c0_i32 = arith.constant 0 : i32
    %c0_i32_0 = arith.constant 0 : i32
    %c0_i32_1 = arith.constant 0 : i32
    return %c0_i32, %c0_i32_0 : i32, i32
  }
  func.func @transform_3(%arg0: i32) -> (i32, i32) {
    %c0_i32 = arith.constant 0 : i32
    %c0_i32_0 = arith.constant 0 : i32
    %c0_i32_1 = arith.constant 0 : i32
    return %c0_i32, %c0_i32_0 : i32, i32
  }
  func.func @transform_4(%arg0: i32) -> (i32, i32) {
    %c0_i32 = arith.constant 0 : i32
    %c0_i32_0 = arith.constant 0 : i32
    %c0_i32_1 = arith.constant 0 : i32
    return %c0_i32, %c0_i32_0 : i32, i32
  }
  func.func @transform_5(%arg0: i32) -> (i32, i32) {
    %c0_i32 = arith.constant 0 : i32
    %c0_i32_0 = arith.constant 0 : i32
    return %arg0, %c0_i32 : i32, i32
  }
}

</mosaic_0001>

<llo_original>
// kernel: tpu_custom_call.1
$region0: #{tpu_custom_call.1}
  #allocation0 [shape = 'u32[]', space=smem, size = 0x4, offset = 0x4, fixed_abs, tag = 'smem constant byte address 0x4 - core index']
  #allocation1 [shape = 'u32[72,128]{1,0:T(1,128)}', space=vmem, size = 0x9000, scoped, tag = 'internal scratch']
  %s0 = inlined_call_operand.vmem [shape: f32[8,4], index: 0, kind: input, shape index: {}]
  %s1 = inlined_call_operand.vmem [shape: f32[4,128], index: 1, kind: input, shape index: {}]
  %s2 = inlined_call_operand.vmem [shape: f32[1,128], index: 2, kind: input, shape index: {}]
  %s3 = inlined_call_operand.hbm [shape: f32[128,128], index: 3, kind: input, shape index: {}]
  %s4 = inlined_call_operand.vmem [shape: f32[1,128], index: 4, kind: input, shape index: {}]
  %s5 = inlined_call_operand.hbm [shape: f32[8,128], index: 5, kind: output, shape index: {}]
  %s6 = sld [smem:[#allocation0]]
  $region34: #{tpu_custom_call.1} parent=0
    _
  %s8 = ssub.s32 1, %s6
  %s9 = scalar_select 0, %s8, %s6
  $region1: #{tpu_custom_call.1} parent=0
    #allocation2 [shape = 'u8[65536]{0}', space=vmem, size = 0x10000, scoped, tag = 'input window, operand 3, single buffered']
    #allocation3 [shape = 's32[1]{0}', space=sflag, size = 0x4, scoped, tag = 'scoped memory for tpu_custom_call.1']
    #allocation4 [shape = 's32[1]{0}', space=sflag, size = 0x4, scoped, tag = 'scoped memory for tpu_custom_call.1']
    #allocation5 [shape = 'u8[4096]{0}', space=vmem, size = 0x1000, scoped, tag = 'output window, operand 0, single buffered']
    %10 = vsyncpa [#allocation3], 0
    %11 = vsyncpa [#allocation4], 0
    // Predicated region
    $region2: #{tpu_custom_call.1} parent=1 // pred_check
      _
    $region3: #{tpu_custom_call.1} parent=1 // pred_check_branch
      %13 = sbr.rel (0) target = $region5
    $region4: #{tpu_custom_call.1} parent=1 // pred_region
      _
    $region5: #{tpu_custom_call.1} parent=1 // pred_fallthru
      _
    // Predicated region
    $region6: #{tpu_custom_call.1} parent=1 // pred_check
      _
    $region7: #{tpu_custom_call.1} parent=1 // pred_check_branch
      %15 = sbr.rel (0) target = $region9
    $region8: #{tpu_custom_call.1} parent=1 // pred_region
      _
    $region9: #{tpu_custom_call.1} parent=1 // pred_fallthru
      _
    // Predicated region
    $region10: #{tpu_custom_call.1} parent=1 // pred_check
      _
    $region11: #{tpu_custom_call.1} parent=1 // pred_check_branch
      %17 = sbr.rel (0) target = $region13
    $region12: #{tpu_custom_call.1} parent=1 // pred_region
      _
    $region13: #{tpu_custom_call.1} parent=1 // pred_fallthru
      _
    // Predicated region
    $region14: #{tpu_custom_call.1} parent=1 // pred_check
      _
    $region15: #{tpu_custom_call.1} parent=1 // pred_check_branch
      %19 = sbr.rel (0) target = $region17
    $region16: #{tpu_custom_call.1} parent=1 // pred_region
      %21 = vsyncadd [#allocation3], 0
      %s22 = sshll.u32 %s3, 4
      %s23 = int_to_ptr.hbm [resolvable:$true] %s22
      %s24 = sshll.u32 [#allocation2], 4
      %s25 = int_to_ptr.vmem [resolvable:$true] %s24
      %30 = dma.hbm_to_vmem [thread:$0]  %s23, 2048, %s25, [#allocation3], 128, 128, 8
    $region17: #{tpu_custom_call.1} parent=1 // pred_fallthru
      _
    // Predicated region
    $region18: #{tpu_custom_call.1} parent=1 // pred_check
      _
    $region19: #{tpu_custom_call.1} parent=1 // pred_check_branch
      %32 = sbr.rel (0) target = $region21
    $region20: #{tpu_custom_call.1} parent=1 // pred_region
      _
    $region21: #{tpu_custom_call.1} parent=1 // pred_fallthru
      _
    // Predicated region
    $region22: #{tpu_custom_call.1} parent=1 // pred_check
      _
    $region23: #{tpu_custom_call.1} parent=1 // pred_check_branch
      %34 = sbr.rel (0) target = $region25
    $region24: #{tpu_custom_call.1} parent=1 // pred_region
      %36 = dma.done [#allocation3], 2048
    $region25: #{tpu_custom_call.1} parent=1 // pred_fallthru
      _
    %v37 = vld [vmem:[%s0] sm:$0xff]
    %v38 = vld [vmem:[%s1] sm:$0xf]
    %v39 = vld [vmem:[%s2] sm:$0x1]
    %41 = vset.pattern.permute.xlu0 0
    %42 = vperm.xlu0 %41, %v37
    %v43 = vpop.permute.xlu0 %42
    %v45 = vperm.slane %v38, 0
    %v46 = vmul.f32 %v43, %v45
    %v48 = vperm.slane %v39, 0
    %v50 = vadd.f32 %v48, %v46
    %51 = vset.pattern.permute.xlu0 1
    %52 = vperm.xlu0 %51, %v37
    %v53 = vpop.permute.xlu0 %52
    %v55 = vperm.slane %v38, 1
    %v56 = vmul.f32 %v53, %v55
    %v57 = vadd.f32 %v50, %v56
    %58 = vset.pattern.permute.xlu0 2
    %59 = vperm.xlu0 %58, %v37
    %v60 = vpop.permute.xlu0 %59
    %v62 = vperm.slane %v38, 2
    %v63 = vmul.f32 %v60, %v62
    %v64 = vadd.f32 %v57, %v63
    %65 = vset.pattern.permute.xlu0 3
    %66 = vperm.xlu0 %65, %v37
    %v67 = vpop.permute.xlu0 %66
    %v69 = vperm.slane %v38, 3
    %v70 = vmul.f32 %v67, %v69
    %v71 = vadd.f32 %v64, %v70
    %v72 = vmax.f32 %v71, 0.0
    %v73 = vld [vmem:[#allocation2] sm:$0xff]
    %v74 = vld [vmem:[#allocation2 + $0x8] sm:$0xff]
    %v75 = vld [vmem:[#allocation2 + $0x10] sm:$0xff]
    %v76 = vld [vmem:[#allocation2 + $0x18] sm:$0xff]
    %v77 = vld [vmem:[#allocation2 + $0x20] sm:$0xff]
    %v78 = vld [vmem:[#allocation2 + $0x28] sm:$0xff]
    %v79 = vld [vmem:[#allocation2 + $0x30] sm:$0xff]
    %v80 = vld [vmem:[#allocation2 + $0x38] sm:$0xff]
    %v81 = vld [vmem:[#allocation2 + $0x40] sm:$0xff]
    %v82 = vld [vmem:[#allocation2 + $0x48] sm:$0xff]
    %v83 = vld [vmem:[#allocation2 + $0x50] sm:$0xff]
    %v84 = vld [vmem:[#allocation2 + $0x58] sm:$0xff]
    %v85 = vld [vmem:[#allocation2 + $0x60] sm:$0xff]
    %v86 = vld [vmem:[#allocation2 + $0x68] sm:$0xff]
    %v87 = vld [vmem:[#allocation2 + $0x70] sm:$0xff]
    %v88 = vld [vmem:[#allocation2 + $0x78] sm:$0xff]
    %v89 = vld [vmem:[%s4] sm:$0x1]
    %v91 = vperm.slane %v89, 0
    %93 = vmatpush.msra.mxu0 %v88
    %94 = vmatpush.msra.mxu0 %v87
    %95 = vmatpush.msra.mxu0 %v86
    %96 = vmatpush.msra.mxu0 %v85
    %97 = vmatpush.msra.mxu0 %v84
    %98 = vmatpush.msra.mxu0 %v83
    %99 = vmatpush.msra.mxu0 %v82
    %100 = vmatpush.msra.mxu0 %v81
    %101 = vmatpush.msra.mxu0 %v80
    %102 = vmatpush.msra.mxu0 %v79
    %103 = vmatpush.msra.mxu0 %v78
    %104 = vmatpush.msra.mxu0 %v77
    %105 = vmatpush.msra.mxu0 %v76
    %106 = vmatpush.msra.mxu0 %v75
    %107 = vmatpush.msra.mxu0 %v74
    %108 = vmatpush.msra.mxu0 %v73
    %109 = vmatmul.f32.gmra.mxu0 %v72
    %v110 = vpop.f32.mrf.mxu0
    %v111 = vadd.f32 %v91, %v110
    %112 = vdwg.mxu0
    %113 = vst [vmem:[#allocation5] sm:$0xff] %v111
    // Predicated region
    $region26: #{tpu_custom_call.1} parent=1 // pred_check
      _
    $region27: #{tpu_custom_call.1} parent=1 // pred_check_branch
      %115 = sbr.rel (0) target = $region29
    $region28: #{tpu_custom_call.1} parent=1 // pred_region
      %117 = vsyncadd [#allocation4], 0
      %s119 = sshll.u32 [#allocation5], 4
      %s120 = int_to_ptr.vmem [resolvable:$true] %s119
      %s121 = sshll.u32 %s5, 4
      %s122 = int_to_ptr.hbm [resolvable:$true] %s121
      %124 = dma.vmem_to_hbm [thread:$0]  %s120, 128, %s122, [#allocation4]
    $region29: #{tpu_custom_call.1} parent=1 // pred_fallthru
      _
    // Predicated region
    $region30: #{tpu_custom_call.1} parent=1 // pred_check
      _
    $region31: #{tpu_custom_call.1} parent=1 // pred_check_branch
      %126 = sbr.rel (0) target = $region33
    $region32: #{tpu_custom_call.1} parent=1 // pred_region
      %128 = dma.done [#allocation4], 128
    $region33: #{tpu_custom_call.1} parent=1 // pred_fallthru
      _
    %129 = vsyncpa [#allocation3], 1
    %130 = vsyncpa [#allocation4], 1

</llo_original>
